<compile_context>
chip_gen: v7x
topology: tpu7x:2x2x1
jax: 0.10.0
libtpu: 0.0.40
codegen_flags: <defaults>
</compile_context>

<pallas_src>
import jax
import jax.numpy as jnp
from jax.experimental import pallas as pl
from jax.experimental.pallas import tpu as pltpu

EPS = 1e-5


def spectral_normalize(w, u, n_power_iterations=1):
    """Glue: matches torch.nn.utils.spectral_norm (dim=0, eps=1e-12, 1 power iter)."""
    nz = w.shape[0]
    w_mat = w.reshape(nz, -1)

    def l2n(x):
        return x / (jnp.linalg.norm(x) + 1e-12)

    u_ = l2n(u)
    v_ = None
    for _ in range(n_power_iterations):
        v_ = l2n(w_mat.T @ u_)
        u_ = l2n(w_mat @ v_)
    sigma = u_ @ (w_mat @ v_)
    return w / sigma


def _pick_tile(n, target):
    """Largest multiple-of-128 divisor of n that is <= target (fallback: n)."""
    if n % 128 != 0:
        return n  # unaligned small shape: use the full (unblocked) extent
    t = max(128, (min(target, n) // 128) * 128)
    while n % t != 0:
        t -= 128
    return t


def _mm_stats_kernel(noise_ref, w_ref, y_ref, stats_ref):
    # ConvTranspose2d on a 1x1 input == plain matmul (MXU), f32 accumulation,
    # default precision (review: no Precision.HIGHEST multi-pass decomposition).
    y = jnp.dot(noise_ref[...], w_ref[...], preferred_element_type=jnp.float32)
    y_ref[...] = y
    # Per-column partial BatchNorm statistics (reduce over batch).  The tiny
    # per-channel reduction over spatial columns is done in the wrapper.
    col_sum = jnp.sum(y, axis=0, keepdims=True)
    col_sq = jnp.sum(y * y, axis=0, keepdims=True)
    stats_ref[...] = jnp.concatenate([col_sum, col_sq], axis=0)


def _bn_glu_kernel(ya_ref, yg_ref, sa_ref, ba_ref, sg_ref, bg_ref, o_ref):
    # Fused BN affine (scale/shift precomputed per column) + GLU gate.
    a = ya_ref[...] * sa_ref[...] + ba_ref[...]
    g = yg_ref[...] * sg_ref[...] + bg_ref[...]
    o_ref[...] = a * jax.nn.sigmoid(g)


def init_layer_forward(noise, w_convT, gamma, beta, u, *, sz):
    """noise: (B, nz) f32; w_convT: (nz, C2, sz, sz); gamma/beta: (C2,); u: (nz,)."""
    B, nz = noise.shape
    C2 = w_convT.shape[1]
    S = sz * sz
    C = C2 // 2
    CS = C * S
    C2S = C2 * S

    # ---- parameter glue (tiny, plain JAX) ----
    w_sn = spectral_normalize(w_convT, u)
    w_flat = w_sn.reshape(nz, C2S).astype(jnp.float32)     # col = c*S + (i*sz + j)
    noise_f32 = noise.astype(jnp.float32)

    vmem_limit = 32 * 1024 * 1024  # fits v7x (64 MiB phys) and raises v5e default

    # ---- pass 1: tiled matmul + per-column batch statistics ----
    TN = _pick_tile(C2S, 1024)                              # lane-dense weight tiles
    y_flat, col_stats = pl.pallas_call(
        _mm_stats_kernel,
        out_shape=(jax.ShapeDtypeStruct((B, C2S), jnp.float32),
                   jax.ShapeDtypeStruct((2, C2S), jnp.float32)),
        grid=(C2S // TN,),
        in_specs=[
            pl.BlockSpec((B, nz), lambda j: (0, 0)),
            pl.BlockSpec((nz, TN), lambda j: (0, j)),
        ],
        out_specs=(
            pl.BlockSpec((B, TN), lambda j: (0, j)),
            pl.BlockSpec((2, TN), lambda j: (0, j)),
        ),
        compiler_params=pltpu.CompilerParams(
            dimension_semantics=("parallel",),
            vmem_limit_bytes=vmem_limit),
    )(noise_f32, w_flat)

    # ---- tiny per-channel BN reduction + fused affine (C2-sized glue) ----
    ch_stats = col_stats.reshape(2, C2, S).sum(axis=-1) / float(B * S)  # (2, C2)
    mean = ch_stats[0]
    var = jnp.maximum(ch_stats[1] - mean * mean, 0.0)       # clamp single-pass var
    scale = gamma.astype(jnp.float32) * jax.lax.rsqrt(var + EPS)
    shift = beta.astype(jnp.float32) - mean * scale
    scale_full = jnp.repeat(scale, S)                       # (C2S,)
    shift_full = jnp.repeat(shift, S)
    scale_a = scale_full[:CS].reshape(1, CS)
    shift_a = shift_full[:CS].reshape(1, CS)
    scale_g = scale_full[CS:].reshape(1, CS)
    shift_g = shift_full[CS:].reshape(1, CS)

    # ---- pass 2: fused BN affine + GLU, lane-dense output tiles ----
    if CS % 128 == 0:
        # Aligned: read both GLU halves straight out of y_flat via index maps.
        TN2 = _pick_tile(CS, 1024)
        n_half = CS // TN2
        ya_arr, yg_arr = y_flat, y_flat
        ya_map = lambda j: (0, j)
        yg_map = lambda j, n_half=n_half: (0, j + n_half)
    else:
        # Small/unaligned shapes: one tiny wrapper slice so the GLU split never
        # produces a sub-128-lane block of the full array.
        TN2 = CS
        ya_arr = y_flat[:, :CS]
        yg_arr = y_flat[:, CS:]
        ya_map = lambda j: (0, j)
        yg_map = lambda j: (0, j)

    out_flat = pl.pallas_call(
        _bn_glu_kernel,
        out_shape=jax.ShapeDtypeStruct((B, CS), jnp.float32),
        grid=(CS // TN2,),
        in_specs=[
            pl.BlockSpec((B, TN2), ya_map),
            pl.BlockSpec((B, TN2), yg_map),
            pl.BlockSpec((1, TN2), lambda j: (0, j)),
            pl.BlockSpec((1, TN2), lambda j: (0, j)),
            pl.BlockSpec((1, TN2), lambda j: (0, j)),
            pl.BlockSpec((1, TN2), lambda j: (0, j)),
        ],
        out_specs=pl.BlockSpec((B, TN2), lambda j: (0, j)),
        compiler_params=pltpu.CompilerParams(
            dimension_semantics=("parallel",),
            vmem_limit_bytes=vmem_limit),
    )(ya_arr, yg_arr, scale_a, shift_a, scale_g, shift_g)

    # glue: back to NCHW
    return out_flat.reshape(B, C, sz, sz)


def init_layer_reference(noise, w_convT, gamma, beta, u, *, sz):
    """Pure-JAX reference of the PyTorch forward (for sanity checking)."""
    w_sn = spectral_normalize(w_convT, u)
    y = jnp.einsum("bz,zcij->bcij", noise, w_sn,
                   precision=jax.lax.Precision.HIGHEST)     # ConvT on 1x1 input
    mean = y.mean(axis=(0, 2, 3), keepdims=True)
    var = y.var(axis=(0, 2, 3), keepdims=True)              # biased (training BN)
    C2 = w_sn.shape[1]
    y = (y - mean) / jnp.sqrt(var + EPS)
    y = y * gamma.reshape(1, C2, 1, 1) + beta.reshape(1, C2, 1, 1)
    C = C2 // 2
    return y[:, :C] * jax.nn.sigmoid(y[:, C:])


if __name__ == "__main__":
    # Small but lane-friendly shapes: batch=8, nz=64, channel=16, sz=4
    #   -> C2S = 512 (weight columns), CS = 256 (output columns), out (8,16,4,4)
    B, NZ, CHANNEL, SZ = 8, 64, 16, 4
    C2 = CHANNEL * 2

    key = jax.random.PRNGKey(0)
    k_noise, k_w, k_u = jax.random.split(key, 3)

    noise = jax.random.normal(k_noise, (B, NZ), dtype=jnp.float32)
    # ConvTranspose2d weight shape: (in_channels, out_channels, kH, kW)
    w_convT = 0.1 * jax.random.normal(k_w, (NZ, C2, SZ, SZ), dtype=jnp.float32)
    gamma = jnp.ones((C2,), dtype=jnp.float32)      # BatchNorm2d default affine init
    beta = jnp.zeros((C2,), dtype=jnp.float32)
    u = jax.random.normal(k_u, (NZ,), dtype=jnp.float32)  # spectral-norm power-iter vector

    out = init_layer_forward(noise, w_convT, gamma, beta, u, sz=SZ)
    out = jax.block_until_ready(out)

    ref = init_layer_reference(noise, w_convT, gamma, beta, u, sz=SZ)
    assert out.shape == (B, CHANNEL, SZ, SZ), out.shape
    err = float(jnp.max(jnp.abs(out - ref)))
    assert jnp.allclose(out, ref, atol=2e-2, rtol=2e-2), err

    print("KERNEL_OK")
</pallas_src>

<mosaic_0001>
module attributes {stable_mosaic.version = 11 : i64} {
  func.func @_mm_stats_kernel(%arg0: i32, %arg1: memref<8x64xf32, #tpu.memory_space<vmem>>, %arg2: memref<64x512xf32, #tpu.memory_space<vmem>>, %arg3: memref<8x512xf32, #tpu.memory_space<vmem>>, %arg4: memref<2x512xf32, #tpu.memory_space<vmem>>) attributes {dimension_semantics = [#tpu.dimension_semantics<parallel>], iteration_bounds = array<i64: 1>, scalar_prefetch = 0 : i64, scratch_operands = 0 : i64, tpu.core_type = #tpu.core_type<tc>, window_params = [{pipeline_mode = #tpu.pipeline_mode<synchronous>, transform_indices = @transform_0, window_bounds = array<i64: 8, 64>}, {transform_indices = @transform_1, window_bounds = array<i64: 64, 512>}, {transform_indices = @transform_2, window_bounds = array<i64: 8, 512>}, {transform_indices = @transform_3, window_bounds = array<i64: 2, 512>}]} {
    %c0 = arith.constant 0 : index
    %c0_0 = arith.constant 0 : index
    %0 = vector.load %arg1[%c0, %c0_0] : memref<8x64xf32, #tpu.memory_space<vmem>>, vector<8x64xf32>
    %c0_1 = arith.constant 0 : index
    %c0_2 = arith.constant 0 : index
    %1 = vector.load %arg2[%c0_1, %c0_2] : memref<64x512xf32, #tpu.memory_space<vmem>>, vector<64x512xf32>
    %cst = arith.constant dense<0.000000e+00> : vector<8x512xf32>
    %2 = tpu.matmul %0, %1, %cst {dimension_numbers = #tpu.dot_dimension_numbers<[1], [0], [0], [1], [0, 0, 1, 1], [], []>} : vector<8x64xf32>, vector<64x512xf32>, vector<8x512xf32> -> vector<8x512xf32>
    %c0_3 = arith.constant 0 : index
    %c0_4 = arith.constant 0 : index
    %3 = vector.load %arg3[%c0_3, %c0_4] : memref<8x512xf32, #tpu.memory_space<vmem>>, vector<8x512xf32>
    tpu.vector_store %arg3[%c0_3, %c0_4], %2 {strides = array<i32>} : memref<8x512xf32, #tpu.memory_space<vmem>>, vector<8x512xf32>,
    %cst_5 = arith.constant dense<0.000000e+00> : vector<512xf32>
    %4 = vector.multi_reduction <add>, %2, %cst_5 [0] : vector<8x512xf32> to vector<512xf32>
    %5 = vector.shape_cast %4 : vector<512xf32> to vector<1x512xf32>
    %6 = arith.mulf %2, %2 : vector<8x512xf32>
    %cst_6 = arith.constant dense<0.000000e+00> : vector<512xf32>
    %7 = vector.multi_reduction <add>, %6, %cst_6 [0] : vector<8x512xf32> to vector<512xf32>
    %8 = vector.shape_cast %7 : vector<512xf32> to vector<1x512xf32>
    %9 = tpu.concatenate %5, %8 in 0 : vector<1x512xf32>, vector<1x512xf32> -> vector<2x512xf32>
    %c0_7 = arith.constant 0 : index
    %c0_8 = arith.constant 0 : index
    %10 = vector.load %arg4[%c0_7, %c0_8] : memref<2x512xf32, #tpu.memory_space<vmem>>, vector<2x512xf32>
    tpu.vector_store %arg4[%c0_7, %c0_8], %9 {strides = array<i32>} : memref<2x512xf32, #tpu.memory_space<vmem>>, vector<2x512xf32>,
    return
  }
  func.func @transform_0(%arg0: i32) -> (i32, i32) {
    %c0_i32 = arith.constant 0 : i32
    %c0_i32_0 = arith.constant 0 : i32
    %c0_i32_1 = arith.constant 0 : i32
    return %c0_i32, %c0_i32_0 : i32, i32
  }
  func.func @transform_1(%arg0: i32) -> (i32, i32) {
    %c0_i32 = arith.constant 0 : i32
    %c0_i32_0 = arith.constant 0 : i32
    return %c0_i32, %arg0 : i32, i32
  }
  func.func @transform_2(%arg0: i32) -> (i32, i32) {
    %c0_i32 = arith.constant 0 : i32
    %c0_i32_0 = arith.constant 0 : i32
    return %c0_i32, %arg0 : i32, i32
  }
  func.func @transform_3(%arg0: i32) -> (i32, i32) {
    %c0_i32 = arith.constant 0 : i32
    %c0_i32_0 = arith.constant 0 : i32
    return %c0_i32, %arg0 : i32, i32
  }
}

</mosaic_0001>

<llo_original>
// kernel: tpu_custom_call.1
$region0: #{tpu_custom_call.1}
  #allocation0 [shape = 'u32[]', space=smem, size = 0x4, offset = 0x4, fixed_abs, tag = 'smem constant byte address 0x4 - core index']
  #allocation1 [shape = 'u32[144,128]{1,0:T(1,128)}', space=vmem, size = 0x12000, scoped, tag = 'internal scratch']
  %s0 = inlined_call_operand.hbm [shape: f32[8,64], index: 0, kind: input, shape index: {}]
  %s1 = inlined_call_operand.hbm [shape: f32[64,512], index: 1, kind: input, shape index: {}]
  %s2 = inlined_call_operand.hbm [shape: f32[8,512], index: 2, kind: output, shape index: {0}]
  %s3 = inlined_call_operand.hbm [shape: f32[2,512], index: 3, kind: output, shape index: {1}]
  %4 = xla_tuple %s2, %s3
  %s5 = sld [smem:[#allocation0]]
  $region34: #{tpu_custom_call.1} parent=0
    _
  %s7 = ssub.s32 1, %s5
  %s8 = scalar_select 0, %s7, %s5
  $region1: #{tpu_custom_call.1} parent=0
    #allocation2 [shape = 'u8[4096]{0}', space=vmem, size = 0x1000, scoped, tag = 'input window, operand 0, single buffered']
    #allocation3 [shape = 's32[1]{0}', space=sflag, size = 0x4, scoped, tag = 'scoped memory for tpu_custom_call.1']
    #allocation4 [shape = 's32[1]{0}', space=sflag, size = 0x4, scoped, tag = 'scoped memory for tpu_custom_call.1']
    #allocation5 [shape = 'u8[131072]{0}', space=vmem, size = 0x20000, scoped, tag = 'input window, operand 1, single buffered']
    #allocation6 [shape = 's32[1]{0}', space=sflag, size = 0x4, scoped, tag = 'scoped memory for tpu_custom_call.1']
    #allocation7 [shape = 'u8[16384]{0}', space=vmem, size = 0x4000, scoped, tag = 'output window, operand 0, single buffered']
    #allocation8 [shape = 'u8[4096]{0}', space=vmem, size = 0x1000, scoped, tag = 'output window, operand 1, single buffered']
    #allocation9 [shape = 's32[1]{0}', space=sflag, size = 0x4, scoped, tag = 'scoped memory for tpu_custom_call.1']
    %9 = vsyncpa [#allocation3], 0
    %10 = vsyncpa [#allocation6], 0
    %11 = vsyncpa [#allocation4], 0
    %12 = vsyncpa [#allocation9], 0
    // Predicated region
    $region2: #{tpu_custom_call.1} parent=1 // pred_check
      _
    $region3: #{tpu_custom_call.1} parent=1 // pred_check_branch
      %14 = sbr.rel (0) target = $region5
    $region4: #{tpu_custom_call.1} parent=1 // pred_region
      %s16 = ssub.s32 128, 128
      %17 = vsyncadd [#allocation3], %s16
      %s19 = sshll.u32 [#allocation2], 4
      %s20 = int_to_ptr.vmem [resolvable:$true] %s19
      %22 = dma.hbm_to_vmem [thread:$0]  %s0, 128, %s20, [#allocation3]
    $region5: #{tpu_custom_call.1} parent=1 // pred_fallthru
      _
    // Predicated region
    $region6: #{tpu_custom_call.1} parent=1 // pred_check
      _
    $region7: #{tpu_custom_call.1} parent=1 // pred_check_branch
      %24 = sbr.rel (0) target = $region9
    $region8: #{tpu_custom_call.1} parent=1 // pred_region
      %s26 = ssub.s32 4096, 4096
      %27 = vsyncadd [#allocation6], %s26
      %s28 = sshll.u32 [#allocation5], 4
      %s29 = int_to_ptr.vmem [resolvable:$true] %s28
      %34 = dma.hbm_to_vmem [thread:$0]  %s1, 4096, %s29, [#allocation6], 512, 512, 32
    $region9: #{tpu_custom_call.1} parent=1 // pred_fallthru
      _
    // Predicated region
    $region10: #{tpu_custom_call.1} parent=1 // pred_check
      _
    $region11: #{tpu_custom_call.1} parent=1 // pred_check_branch
      %36 = sbr.rel (0) target = $region13
    $region12: #{tpu_custom_call.1} parent=1 // pred_region
      %37 = dma.done [#allocation3], 128
    $region13: #{tpu_custom_call.1} parent=1 // pred_fallthru
      _
    // Predicated region
    $region14: #{tpu_custom_call.1} parent=1 // pred_check
      _
    $region15: #{tpu_custom_call.1} parent=1 // pred_check_branch
      %39 = sbr.rel (0) target = $region17
    $region16: #{tpu_custom_call.1} parent=1 // pred_region
      %40 = dma.done [#allocation6], 4096
    $region17: #{tpu_custom_call.1} parent=1 // pred_fallthru
      _
    %v41 = vld [vmem:[#allocation2] sm:$0xff]
    %v42 = vld [vmem:[#allocation5] sm:$0xff]
    %v43 = vld [vmem:[#allocation5 + $0x8] sm:$0xff]
    %v44 = vld [vmem:[#allocation5 + $0x10] sm:$0xff]
    %v45 = vld [vmem:[#allocation5 + $0x18] sm:$0xff]
    %v46 = vld [vmem:[#allocation5 + $0x20] sm:$0xff]
    %v47 = vld [vmem:[#allocation5 + $0x28] sm:$0xff]
    %v48 = vld [vmem:[#allocation5 + $0x30] sm:$0xff]
    %v49 = vld [vmem:[#allocation5 + $0x38] sm:$0xff]
    %v50 = vld [vmem:[#allocation5 + $0x40] sm:$0xff]
    %v51 = vld [vmem:[#allocation5 + $0x48] sm:$0xff]
    %v52 = vld [vmem:[#allocation5 + $0x50] sm:$0xff]
    %v53 = vld [vmem:[#allocation5 + $0x58] sm:$0xff]
    %v54 = vld [vmem:[#allocation5 + $0x60] sm:$0xff]
    %v55 = vld [vmem:[#allocation5 + $0x68] sm:$0xff]
    %v56 = vld [vmem:[#allocation5 + $0x70] sm:$0xff]
    %v57 = vld [vmem:[#allocation5 + $0x78] sm:$0xff]
    %v58 = vld [vmem:[#allocation5 + $0x80] sm:$0xff]
    %v59 = vld [vmem:[#allocation5 + $0x88] sm:$0xff]
    %v60 = vld [vmem:[#allocation5 + $0x90] sm:$0xff]
    %v61 = vld [vmem:[#allocation5 + $0x98] sm:$0xff]
    %v62 = vld [vmem:[#allocation5 + $0xa0] sm:$0xff]
    %v63 = vld [vmem:[#allocation5 + $0xa8] sm:$0xff]
    %v64 = vld [vmem:[#allocation5 + $0xb0] sm:$0xff]
    %v65 = vld [vmem:[#allocation5 + $0xb8] sm:$0xff]
    %v66 = vld [vmem:[#allocation5 + $0xc0] sm:$0xff]
    %v67 = vld [vmem:[#allocation5 + $0xc8] sm:$0xff]
    %v68 = vld [vmem:[#allocation5 + $0xd0] sm:$0xff]
    %v69 = vld [vmem:[#allocation5 + $0xd8] sm:$0xff]
    %v70 = vld [vmem:[#allocation5 + $0xe0] sm:$0xff]
    %v71 = vld [vmem:[#allocation5 + $0xe8] sm:$0xff]
    %v72 = vld [vmem:[#allocation5 + $0xf0] sm:$0xff]
    %v73 = vld [vmem:[#allocation5 + $0xf8] sm:$0xff]
    %vm74 = vcmask 523264
    %v76 = vsel %vm74, %v41, 0
    %78 = vmatprep.subr.mxu0 %v43
    %79 = vmatpush1.msra.mxu0 %v42
    %80 = vmatprep.subr.mxu0 %v47
    %81 = vmatpush1.msra.mxu0 %v46
    %82 = vmatprep.subr.mxu0 %v51
    %83 = vmatpush1.msra.mxu0 %v50
    %84 = vmatprep.subr.mxu0 %v55
    %85 = vmatpush1.msra.mxu0 %v54
    %86 = vmatprep.subr.mxu0 %v59
    %87 = vmatpush1.msra.mxu0 %v58
    %88 = vmatprep.subr.mxu0 %v63
    %89 = vmatpush1.msra.mxu0 %v62
    %90 = vmatprep.subr.mxu0 %v67
    %91 = vmatpush1.msra.mxu0 %v66
    %92 = vmatprep.subr.mxu0 %v71
    %93 = vmatpush1.msra.mxu0 %v70
    %94 = vmatprep.subr.mxu0 0.0
    %95 = vmatpush1.msra.mxu0 0.0
    %96 = vmatprep.subr.mxu0 0.0
    %97 = vmatpush1.msra.mxu0 0.0
    %98 = vmatprep.subr.mxu0 0.0
    %99 = vmatpush1.msra.mxu0 0.0
    %100 = vmatprep.subr.mxu0 0.0
    %101 = vmatpush1.msra.mxu0 0.0
    %102 = vmatprep.subr.mxu0 0.0
    %103 = vmatpush1.msra.mxu0 0.0
    %104 = vmatprep.subr.mxu0 0.0
    %105 = vmatpush1.msra.mxu0 0.0
    %106 = vmatprep.subr.mxu0 0.0
    %107 = vmatpush1.msra.mxu0 0.0
    %108 = vmatprep.subr.mxu0 0.0
    %109 = vmatpush1.msra.mxu0 0.0
    %110 = vmatprep.subr.mxu0 0.0
    %111 = vmatpush1.msra.mxu0 0.0
    %112 = vmatprep.subr.mxu0 0.0
    %113 = vmatpush1.msra.mxu0 0.0
    %114 = vmatprep.subr.mxu0 0.0
    %115 = vmatpush1.msra.mxu0 0.0
    %116 = vmatprep.subr.mxu0 0.0
    %117 = vmatpush1.msra.mxu0 0.0
    %118 = vmatprep.subr.mxu0 0.0
    %119 = vmatpush1.msra.mxu0 0.0
    %120 = vmatprep.subr.mxu0 0.0
    %121 = vmatpush1.msra.mxu0 0.0
    %122 = vmatprep.subr.mxu0 0.0
    %123 = vmatpush1.msra.mxu0 0.0
    %124 = vmatprep.subr.mxu0 0.0
    %125 = vmatpush1.msra.mxu0 0.0
    %126 = vmatprep.subr.mxu0 0.0
    %127 = vmatpush1.msra.mxu0 0.0
    %128 = vmatprep.subr.mxu0 0.0
    %129 = vmatpush1.msra.mxu0 0.0
    %130 = vmatprep.subr.mxu0 0.0
    %131 = vmatpush1.msra.mxu0 0.0
    %132 = vmatprep.subr.mxu0 0.0
    %133 = vmatpush1.msra.mxu0 0.0
    %134 = vmatprep.subr.mxu0 0.0
    %135 = vmatpush1.msra.mxu0 0.0
    %136 = vmatprep.subr.mxu0 0.0
    %137 = vmatpush1.msra.mxu0 0.0
    %138 = vmatprep.subr.mxu0 0.0
    %139 = vmatpush1.msra.mxu0 0.0
    %140 = vmatprep.subr.mxu0 0.0
    %141 = vmatpush1.msra.mxu0 0.0
    %142 = vmatprep.mubr.f32.mxu0 0.0
    %143 = vmatmul.mubr.f32.gmra.mrb[0].mxu0 %v76
    %v144 = vpop.f32.mrb[0].mxu0
    %v145 = vadd.f32 0.0, %v144
    %v146 = vpop.f32.mrb[0].mxu0
    %v147 = vadd.f32 0.0, %v146
    %148 = vdwg.mxu0
    %149 = vmatprep.subr.mxu0 %v45
    %150 = vmatpush1.msra.mxu0 %v44
    %151 = vmatprep.subr.mxu0 %v49
    %152 = vmatpush1.msra.mxu0 %v48
    %153 = vmatprep.subr.mxu0 %v53
    %154 = vmatpush1.msra.mxu0 %v52
    %155 = vmatprep.subr.mxu0 %v57
    %156 = vmatpush1.msra.mxu0 %v56
    %157 = vmatprep.subr.mxu0 %v61
    %158 = vmatpush1.msra.mxu0 %v60
    %159 = vmatprep.subr.mxu0 %v65
    %160 = vmatpush1.msra.mxu0 %v64
    %161 = vmatprep.subr.mxu0 %v69
    %162 = vmatpush1.msra.mxu0 %v68
    %163 = vmatprep.subr.mxu0 %v73
    %164 = vmatpush1.msra.mxu0 %v72
    %165 = vmatprep.subr.mxu0 0.0
    %166 = vmatpush1.msra.mxu0 0.0
    %167 = vmatprep.subr.mxu0 0.0
    %168 = vmatpush1.msra.mxu0 0.0
    %169 = vmatprep.subr.mxu0 0.0
    %170 = vmatpush1.msra.mxu0 0.0
    %171 = vmatprep.subr.mxu0 0.0
    %172 = vmatpush1.msra.mxu0 0.0
    %173 = vmatprep.subr.mxu0 0.0
    %174 = vmatpush1.msra.mxu0 0.0
    %175 = vmatprep.subr.mxu0 0.0
    %176 = vmatpush1.msra.mxu0 0.0
    %177 = vmatprep.subr.mxu0 0.0
    %178 = vmatpush1.msra.mxu0 0.0
    %179 = vmatprep.subr.mxu0 0.0
    %180 = vmatpush1.msra.mxu0 0.0
    %181 = vmatprep.subr.mxu0 0.0
    %182 = vmatpush1.msra.mxu0 0.0
    %183 = vmatprep.subr.mxu0 0.0
    %184 = vmatpush1.msra.mxu0 0.0
    %185 = vmatprep.subr.mxu0 0.0
    %186 = vmatpush1.msra.mxu0 0.0
    %187 = vmatprep.subr.mxu0 0.0
    %188 = vmatpush1.msra.mxu0 0.0
    %189 = vmatprep.subr.mxu0 0.0
    %190 = vmatpush1.msra.mxu0 0.0
    %191 = vmatprep.subr.mxu0 0.0
    %192 = vmatpush1.msra.mxu0 0.0
    %193 = vmatprep.subr.mxu0 0.0
    %194 = vmatpush1.msra.mxu0 0.0
    %195 = vmatprep.subr.mxu0 0.0
    %196 = vmatpush1.msra.mxu0 0.0
    %197 = vmatprep.subr.mxu0 0.0
    %198 = vmatpush1.msra.mxu0 0.0
    %199 = vmatprep.subr.mxu0 0.0
    %200 = vmatpush1.msra.mxu0 0.0
    %201 = vmatprep.subr.mxu0 0.0
    %202 = vmatpush1.msra.mxu0 0.0
    %203 = vmatprep.subr.mxu0 0.0
    %204 = vmatpush1.msra.mxu0 0.0
    %205 = vmatprep.subr.mxu0 0.0
    %206 = vmatpush1.msra.mxu0 0.0
    %207 = vmatprep.subr.mxu0 0.0
    %208 = vmatpush1.msra.mxu0 0.0
    %209 = vmatprep.subr.mxu0 0.0
    %210 = vmatpush1.msra.mxu0 0.0
    %211 = vmatprep.subr.mxu0 0.0
    %212 = vmatpush1.msra.mxu0 0.0
    %213 = vmatprep.mubr.f32.mxu0 0.0
    %214 = vmatmul.mubr.f32.gmra.mrb[0].mxu0 %v76
    %v215 = vpop.f32.mrb[0].mxu0
    %v216 = vadd.f32 0.0, %v215
    %v217 = vpop.f32.mrb[0].mxu0
    %v218 = vadd.f32 0.0, %v217
    %219 = vdwg.mxu0
    %220 = vst [vmem:[#allocation7] sm:$0xff] %v145
    %221 = vst [vmem:[#allocation7 + $0x8] sm:$0xff] %v147
    %222 = vst [vmem:[#allocation7 + $0x10] sm:$0xff] %v216
    %223 = vst [vmem:[#allocation7 + $0x18] sm:$0xff] %v218
    %v224 = vrot.slane %v145, 4
    %v225 = vadd.f32 %v145, %v224
    %v226 = vrot.slane %v225, 2
    %v227 = vadd.f32 %v225, %v226
    %v228 = vrot.slane %v227, 1
    %v229 = vadd.f32 %v227, %v228
    %v230 = vrot.slane %v147, 4
    %v231 = vadd.f32 %v147, %v230
    %v232 = vrot.slane %v231, 2
    %v233 = vadd.f32 %v231, %v232
    %v234 = vrot.slane %v233, 1
    %v235 = vadd.f32 %v233, %v234
    %v236 = vrot.slane %v216, 4
    %v237 = vadd.f32 %v216, %v236
    %v238 = vrot.slane %v237, 2
    %v239 = vadd.f32 %v237, %v238
    %v240 = vrot.slane %v239, 1
    %v241 = vadd.f32 %v239, %v240
    %v242 = vrot.slane %v218, 4
    %v243 = vadd.f32 %v218, %v242
    %v244 = vrot.slane %v243, 2
    %v245 = vadd.f32 %v243, %v244
    %v246 = vrot.slane %v245, 1
    %v247 = vadd.f32 %v245, %v246
    %v248 = vmul.f32 %v145, %v145
    %v249 = vmul.f32 %v147, %v147
    %v250 = vmul.f32 %v216, %v216
    %v251 = vmul.f32 %v218, %v218
    %v252 = vrot.slane %v248, 4
    %v253 = vadd.f32 %v248, %v252
    %v254 = vrot.slane %v253, 2
    %v255 = vadd.f32 %v253, %v254
    %v256 = vrot.slane %v255, 1
    %v257 = vadd.f32 %v255, %v256
    %v258 = vrot.slane %v249, 4
    %v259 = vadd.f32 %v249, %v258
    %v260 = vrot.slane %v259, 2
    %v261 = vadd.f32 %v259, %v260
    %v262 = vrot.slane %v261, 1
    %v263 = vadd.f32 %v261, %v262
    %v264 = vrot.slane %v250, 4
    %v265 = vadd.f32 %v250, %v264
    %v266 = vrot.slane %v265, 2
    %v267 = vadd.f32 %v265, %v266
    %v268 = vrot.slane %v267, 1
    %v269 = vadd.f32 %v267, %v268
    %v270 = vrot.slane %v251, 4
    %v271 = vadd.f32 %v251, %v270
    %v272 = vrot.slane %v271, 2
    %v273 = vadd.f32 %v271, %v272
    %v274 = vrot.slane %v273, 1
    %v275 = vadd.f32 %v273, %v274
    %vm276 = vcmask 1040384
    %v277 = vsel %vm276, %v229, %v257
    %v278 = vsel %vm276, %v235, %v263
    %v279 = vsel %vm276, %v241, %v269
    %v280 = vsel %vm276, %v247, %v275
    %v285 = vcombine.low %v277, %v278
    %v286 = vcombine.low %v279, %v280
    %v288 = vunpack.c.l.s4 1983009808
    %v289 = vunpack.c.0.s8 %v288
    %v290 = vlaneseq
    %v291 = vshrl.u32 %v290, 7
    %v292 = vsub.s32 %v289, %v291
    %v293 = vrot.slane %v285, %v292
    %v295 = vunpack.c.l.s4 1983009808
    %v296 = vunpack.c.0.s8 %v295
    %v297 = vlaneseq
    %v298 = vshrl.u32 %v297, 7
    %v299 = vsub.s32 %v296, %v298
    %v300 = vrot.slane %v286, %v299
    %v301 = vcombine.low %v293, %v300
    %303 = vst [vmem:[#allocation8] sm:$0xff] %v301
    // Predicated region
    $region18: #{tpu_custom_call.1} parent=1 // pred_check
      _
    $region19: #{tpu_custom_call.1} parent=1 // pred_check_branch
      %305 = sbr.rel (0) target = $region21
    $region20: #{tpu_custom_call.1} parent=1 // pred_region
      %s307 = ssub.s32 512, 512
      %308 = vsyncadd [#allocation4], %s307
      %s310 = sshll.u32 [#allocation7], 4
      %s311 = int_to_ptr.vmem [resolvable:$true] %s310
      %313 = dma.vmem_to_hbm [thread:$0]  %s311, 512, %s2, [#allocation4]
    $region21: #{tpu_custom_call.1} parent=1 // pred_fallthru
      _
    // Predicated region
    $region22: #{tpu_custom_call.1} parent=1 // pred_check
      _
    $region23: #{tpu_custom_call.1} parent=1 // pred_check_branch
      %315 = sbr.rel (0) target = $region25
    $region24: #{tpu_custom_call.1} parent=1 // pred_region
      %s317 = ssub.s32 128, 128
      %318 = vsyncadd [#allocation9], %s317
      %s320 = sshll.u32 [#allocation8], 4
      %s321 = int_to_ptr.vmem [resolvable:$true] %s320
      %323 = dma.vmem_to_hbm [thread:$0]  %s321, 128, %s3, [#allocation9]
    $region25: #{tpu_custom_call.1} parent=1 // pred_fallthru
      _
    // Predicated region
    $region26: #{tpu_custom_call.1} parent=1 // pred_check
      _
    $region27: #{tpu_custom_call.1} parent=1 // pred_check_branch
      %325 = sbr.rel (0) target = $region29
    $region28: #{tpu_custom_call.1} parent=1 // pred_region
      %326 = dma.done [#allocation4], 512
    $region29: #{tpu_custom_call.1} parent=1 // pred_fallthru
      _
    // Predicated region
    $region30: #{tpu_custom_call.1} parent=1 // pred_check
      _
    $region31: #{tpu_custom_call.1} parent=1 // pred_check_branch
      %328 = sbr.rel (0) target = $region33
    $region32: #{tpu_custom_call.1} parent=1 // pred_region
      %329 = dma.done [#allocation9], 128
    $region33: #{tpu_custom_call.1} parent=1 // pred_fallthru
      _
    %330 = vsyncpa [#allocation3], 1
    %331 = vsyncpa [#allocation6], 1
    %332 = vsyncpa [#allocation4], 1
    %333 = vsyncpa [#allocation9], 1

</llo_original>
